<compile_context>
chip_gen: v6e
topology: v6e:2x2x1
jax: 0.10.0
libtpu: 0.0.40
codegen_flags: <defaults>
</compile_context>

<pallas_src>
import jax
import jax.numpy as jnp
from jax.experimental import pallas as pl
from jax.experimental.pallas import tpu as pltpu

LANE = 128
SUBLANE = 8


def _round_up(x, m):
    return (x + m - 1) // m * m


def ensemble_kernel(x_ref, w1_ref, b1_ref, w2_ref, b2_ref, o_ref):
    """Fused ensemble forward for one batch tile.

    x_ref  : [TB, S, D]       streamed input tile (f32 or bf16)
    w1_ref : [D, MH_pad]      concat of all members' W1, pre-scaled by 1/S
    b1_ref : [1, MH_pad]      concat of all members' b1 (f32)
    w2_ref : [MH_pad, O_pad]  vstack of aggregation-weighted W2s
    b2_ref : [1, O_pad]       weighted sum of b2s (f32)
    o_ref  : [TB, O_pad]      lane-padded f32 output tile
    """
    # Mean-pool over the sequence axis; the 1/S scale is folded into w1, so
    # this is just a sum.  Accumulate in f32 (v5e VPU has no bf16 anyway).
    pooled = jnp.sum(x_ref[...].astype(jnp.float32), axis=1)           # [TB, D]

    # One wide MXU pass covering all ensemble members' first layers.
    h = jnp.dot(pooled.astype(w1_ref.dtype), w1_ref[...],
                preferred_element_type=jnp.float32)                    # [TB, MH_pad]
    h = jnp.maximum(h + b1_ref[...], 0.0)

    # Second layer + weighted aggregation fused into one matmul.
    out = jnp.dot(h.astype(w2_ref.dtype), w2_ref[...],
                  preferred_element_type=jnp.float32)                  # [TB, O_pad]
    o_ref[...] = (out + b2_ref[...]).astype(o_ref.dtype)


def prepare_ensemble_params(w1, b1, w2, b2, weights, seq_len,
                            *, stream_dtype=jnp.bfloat16):
    """One-time (model-load-time) weight layout fusion.

    w1: [M, D, H]; b1: [M, 1, H]; w2: [M, H, O]; b2: [M, 1, O];
    weights: [M] or [M,1,1] normalized aggregation weights.
    All folding (1/seq_len, aggregation weights) is done in f32 BEFORE any
    cast to the streaming dtype.
    """
    M, D, H = w1.shape
    O = w2.shape[-1]
    MH = M * H
    # Lane-dense hidden concat dim. (Production note: align to 256 on v6e/v7x
    # to match the 256-wide MXU if MH is large anyway.)
    MH_pad = _round_up(max(MH, LANE), LANE)
    O_pad = _round_up(max(O, LANE), LANE)

    w1 = w1.astype(jnp.float32)
    b1 = b1.astype(jnp.float32)
    w2 = w2.astype(jnp.float32)
    b2 = b2.astype(jnp.float32)
    weights = weights.astype(jnp.float32).reshape(M, 1, 1)

    # First layer: concat member weight matrices along the output dim and fold
    # the 1/seq_len mean-pool scale into the weights.
    w1_all = jnp.transpose(w1, (1, 0, 2)).reshape(D, MH) * (1.0 / seq_len)
    b1_all = b1.reshape(1, MH)
    # Second layer: fold aggregation weights into W2/b2 and stack vertically.
    w2_all = (w2 * weights).reshape(MH, O)
    b2_all = jnp.sum(b2 * weights, axis=0).reshape(1, O)

    # Zero-pad to lane-dense shapes; padded hidden lanes are exactly zero
    # after ReLU(0 + 0) and padded W2 rows/cols contribute nothing.
    w1_all = jnp.pad(w1_all, ((0, 0), (0, MH_pad - MH))).astype(stream_dtype)
    b1_all = jnp.pad(b1_all, ((0, 0), (0, MH_pad - MH)))          # f32 bias
    w2_all = jnp.pad(w2_all, ((0, MH_pad - MH), (0, O_pad - O))).astype(stream_dtype)
    b2_all = jnp.pad(b2_all, ((0, 0), (0, O_pad - O)))            # f32 bias

    return dict(w1=w1_all, b1=b1_all, w2=w2_all, b2=b2_all,
                output_dim=O, stream_dtype=stream_dtype)


def ensemble_forward(x, params, *, x_stream_budget_bytes=12 << 20):
    """x: [B, S, D] -> [B, output_dim]. params from prepare_ensemble_params."""
    B, S, D = x.shape
    stream_dtype = params["stream_dtype"]
    O = params["output_dim"]
    w1, b1, w2, b2 = params["w1"], params["b1"], params["w2"], params["b2"]
    O_pad = w2.shape[-1]

    bpe = jnp.dtype(stream_dtype).itemsize

    # Batch tile: multiple of 8 (sublane-full output stores), up to 128, shrunk
    # so the double-buffered x tile stays inside the x-stream VMEM budget
    # (safe for v5e's 16 MiB scoped default and v7x's 64 MiB physical VMEM).
    TB = min(LANE, _round_up(B, SUBLANE))
    while TB > SUBLANE and 2 * TB * S * D * bpe > x_stream_budget_bytes:
        TB -= SUBLANE
    # TODO(synk): for production S so long that even a (8, S, D) tile exceeds
    # the budget, add a second "arbitrary" grid axis over S and accumulate the
    # pooled sum in a [TB, D] f32 VMEM scratch (init/finalize via pl.when).

    B_pad = _round_up(B, TB)
    x = x.astype(stream_dtype)
    if B_pad != B:
        x = jnp.pad(x, ((0, B_pad - B), (0, 0), (0, 0)))

    # Explicit VMEM budget: double-buffered x/out tiles + (conservatively
    # double-buffered) resident weights + margin.
    weight_bytes = (w1.size + w2.size) * bpe + (b1.size + b2.size) * 4
    est = (2 * TB * S * D * bpe + 2 * TB * O_pad * 4
           + 2 * weight_bytes + (2 << 20))
    vmem_limit = int(max(est, 16 << 20))

    grid = (B_pad // TB,)
    out_pad = pl.pallas_call(
        ensemble_kernel,
        out_shape=jax.ShapeDtypeStruct((B_pad, O_pad), jnp.float32),
        grid=grid,
        in_specs=[
            # x: streamed batch tiles, automatically double-buffered.
            # (If xprof shows DMA still exposed, add pipeline_mode=pl.Buffered(3).)
            pl.BlockSpec((TB, S, D), lambda i: (i, 0, 0)),
            # Fused weights/biases: resident (same block for every grid step).
            pl.BlockSpec(w1.shape, lambda i: (0, 0)),
            pl.BlockSpec(b1.shape, lambda i: (0, 0)),
            pl.BlockSpec(w2.shape, lambda i: (0, 0)),
            pl.BlockSpec(b2.shape, lambda i: (0, 0)),
        ],
        out_specs=pl.BlockSpec((TB, O_pad), lambda i: (i, 0)),
        compiler_params=pltpu.CompilerParams(
            # Batch tiles are independent -> shard across both v7x TensorCores.
            dimension_semantics=("parallel",),
            vmem_limit_bytes=vmem_limit,
        ),
    )(x, w1, b1, w2, b2)

    return out_pad[:B, :O]


def reference_forward(x, w1, b1, w2, b2, weights):
    pooled = jnp.mean(x, axis=1)                                     # [B, D]
    h = jnp.maximum(jnp.einsum("bd,mdh->mbh", pooled, w1) + b1, 0.0)
    out = jnp.einsum("mbh,mho->mbo", h, w2) + b2                     # [M, B, O]
    return jnp.sum(weights * out, axis=0)                            # [B, O]


if __name__ == "__main__":
    # Small shapes consistent with the module's forward contract.
    B, S, D = 2, 8, 32        # batch, seq_len, input_dim
    H, O = 32, 4              # per-member hidden dim, output_dim
    M = 3                     # number of ensemble members (from model_configs)

    key = jax.random.PRNGKey(0)
    k_x, k_w1, k_b1, k_w2, k_b2 = jax.random.split(key, 5)

    x = jax.random.normal(k_x, (B, S, D), dtype=jnp.float32)

    # Deterministic synthetic parameters (no checkpoint loading).
    w1 = jax.random.normal(k_w1, (M, D, H), dtype=jnp.float32) * 0.05
    b1 = jax.random.normal(k_b1, (M, 1, H), dtype=jnp.float32) * 0.01
    w2 = jax.random.normal(k_w2, (M, H, O), dtype=jnp.float32) * 0.05
    b2 = jax.random.normal(k_b2, (M, 1, O), dtype=jnp.float32) * 0.01

    # "weighted" aggregation: weights normalized to sum to 1.
    raw_weights = jnp.array([0.5, 0.3, 0.2], dtype=jnp.float32)
    weights = (raw_weights / jnp.sum(raw_weights)).reshape(M, 1, 1)

    ref = reference_forward(x, w1, b1, w2, b2, weights)

    # f32 streaming path: tight check that the algebraic fusion is exact.
    params_f32 = prepare_ensemble_params(w1, b1, w2, b2, weights, S,
                                         stream_dtype=jnp.float32)
    out_f32 = jax.block_until_ready(ensemble_forward(x, params_f32))
    assert out_f32.shape == (B, O)
    assert jnp.allclose(out_f32, ref, atol=1e-4, rtol=1e-4)

    # bf16 streaming path (production roofline config), f32 accumulation.
    params_bf16 = prepare_ensemble_params(w1, b1, w2, b2, weights, S,
                                          stream_dtype=jnp.bfloat16)
    out_bf16 = jax.block_until_ready(ensemble_forward(x, params_bf16))
    assert out_bf16.shape == (B, O)
    assert jnp.allclose(out_bf16, ref, atol=5e-3, rtol=2e-2)

    print("KERNEL_OK")
</pallas_src>

<mosaic_0001>
module attributes {stable_mosaic.version = 11 : i64} {
  func.func @ensemble_kernel(%arg0: i32, %arg1: memref<8x8x32xf32, #tpu.memory_space<vmem>>, %arg2: memref<32x128xf32, #tpu.memory_space<vmem>>, %arg3: memref<1x128xf32, #tpu.memory_space<vmem>>, %arg4: memref<128x128xf32, #tpu.memory_space<vmem>>, %arg5: memref<1x128xf32, #tpu.memory_space<vmem>>, %arg6: memref<8x128xf32, #tpu.memory_space<vmem>>) attributes {dimension_semantics = [#tpu.dimension_semantics<parallel>], iteration_bounds = array<i64: 1>, scalar_prefetch = 0 : i64, scratch_operands = 0 : i64, tpu.core_type = #tpu.core_type<tc>, window_params = [{transform_indices = @transform_0, window_bounds = array<i64: 8, 8, 32>}, {pipeline_mode = #tpu.pipeline_mode<synchronous>, transform_indices = @transform_1, window_bounds = array<i64: 32, 128>}, {pipeline_mode = #tpu.pipeline_mode<synchronous>, transform_indices = @transform_2, window_bounds = array<i64: 1, 128>}, {pipeline_mode = #tpu.pipeline_mode<synchronous>, transform_indices = @transform_3, window_bounds = array<i64: 128, 128>}, {pipeline_mode = #tpu.pipeline_mode<synchronous>, transform_indices = @transform_4, window_bounds = array<i64: 1, 128>}, {transform_indices = @transform_5, window_bounds = array<i64: 8, 128>}]} {
    %c0 = arith.constant 0 : index
    %c0_0 = arith.constant 0 : index
    %c0_1 = arith.constant 0 : index
    %0 = vector.load %arg1[%c0, %c0_0, %c0_1] : memref<8x8x32xf32, #tpu.memory_space<vmem>>, vector<8x8x32xf32>
    %cst = arith.constant dense<0.000000e+00> : vector<8x32xf32>
    %1 = vector.multi_reduction <add>, %0, %cst [1] : vector<8x8x32xf32> to vector<8x32xf32>
    %c0_2 = arith.constant 0 : index
    %c0_3 = arith.constant 0 : index
    %2 = vector.load %arg2[%c0_2, %c0_3] : memref<32x128xf32, #tpu.memory_space<vmem>>, vector<32x128xf32>
    %cst_4 = arith.constant dense<0.000000e+00> : vector<8x128xf32>
    %3 = tpu.matmul %1, %2, %cst_4 {dimension_numbers = #tpu.dot_dimension_numbers<[1], [0], [0], [1], [0, 0, 1, 1], [], []>} : vector<8x32xf32>, vector<32x128xf32>, vector<8x128xf32> -> vector<8x128xf32>
    %c0_5 = arith.constant 0 : index
    %c0_6 = arith.constant 0 : index
    %4 = vector.load %arg3[%c0_5, %c0_6] : memref<1x128xf32, #tpu.memory_space<vmem>>, vector<1x128xf32>
    %5 = vector.broadcast %4 : vector<1x128xf32> to vector<8x128xf32>
    %6 = arith.addf %3, %5 : vector<8x128xf32>
    %cst_7 = arith.constant 0.000000e+00 : f32
    %7 = vector.broadcast %cst_7 : f32 to vector<8x128xf32>
    %8 = arith.maximumf %6, %7 : vector<8x128xf32>
    %c0_8 = arith.constant 0 : index
    %c0_9 = arith.constant 0 : index
    %9 = vector.load %arg4[%c0_8, %c0_9] : memref<128x128xf32, #tpu.memory_space<vmem>>, vector<128x128xf32>
    %cst_10 = arith.constant dense<0.000000e+00> : vector<8x128xf32>
    %10 = tpu.matmul %8, %9, %cst_10 {dimension_numbers = #tpu.dot_dimension_numbers<[1], [0], [0], [1], [0, 0, 1, 1], [], []>} : vector<8x128xf32>, vector<128x128xf32>, vector<8x128xf32> -> vector<8x128xf32>
    %c0_11 = arith.constant 0 : index
    %c0_12 = arith.constant 0 : index
    %11 = vector.load %arg5[%c0_11, %c0_12] : memref<1x128xf32, #tpu.memory_space<vmem>>, vector<1x128xf32>
    %12 = vector.broadcast %11 : vector<1x128xf32> to vector<8x128xf32>
    %13 = arith.addf %10, %12 : vector<8x128xf32>
    %c0_13 = arith.constant 0 : index
    %c0_14 = arith.constant 0 : index
    %14 = vector.load %arg6[%c0_13, %c0_14] : memref<8x128xf32, #tpu.memory_space<vmem>>, vector<8x128xf32>
    tpu.vector_store %arg6[%c0_13, %c0_14], %13 {strides = array<i32>} : memref<8x128xf32, #tpu.memory_space<vmem>>, vector<8x128xf32>,
    return
  }
  func.func @transform_0(%arg0: i32) -> (i32, i32, i32) {
    %c0_i32 = arith.constant 0 : i32
    %c0_i32_0 = arith.constant 0 : i32
    %c0_i32_1 = arith.constant 0 : i32
    return %arg0, %c0_i32, %c0_i32_0 : i32, i32, i32
  }
  func.func @transform_1(%arg0: i32) -> (i32, i32) {
    %c0_i32 = arith.constant 0 : i32
    %c0_i32_0 = arith.constant 0 : i32
    %c0_i32_1 = arith.constant 0 : i32
    return %c0_i32, %c0_i32_0 : i32, i32
  }
  func.func @transform_2(%arg0: i32) -> (i32, i32) {
    %c0_i32 = arith.constant 0 : i32
    %c0_i32_0 = arith.constant 0 : i32
    %c0_i32_1 = arith.constant 0 : i32
    return %c0_i32, %c0_i32_0 : i32, i32
  }
  func.func @transform_3(%arg0: i32) -> (i32, i32) {
    %c0_i32 = arith.constant 0 : i32
    %c0_i32_0 = arith.constant 0 : i32
    %c0_i32_1 = arith.constant 0 : i32
    return %c0_i32, %c0_i32_0 : i32, i32
  }
  func.func @transform_4(%arg0: i32) -> (i32, i32) {
    %c0_i32 = arith.constant 0 : i32
    %c0_i32_0 = arith.constant 0 : i32
    %c0_i32_1 = arith.constant 0 : i32
    return %c0_i32, %c0_i32_0 : i32, i32
  }
  func.func @transform_5(%arg0: i32) -> (i32, i32) {
    %c0_i32 = arith.constant 0 : i32
    %c0_i32_0 = arith.constant 0 : i32
    return %arg0, %c0_i32 : i32, i32
  }
}

</mosaic_0001>

<llo_original>
// kernel: tpu_custom_call.1
$region0: #{tpu_custom_call.1}
  #allocation0 [shape = 'u32[]', space=smem, size = 0x4, offset = 0x4, fixed_abs, tag = 'smem constant byte address 0x4 - core index']
  #allocation1 [shape = 'u32[144,128]{1,0:T(1,128)}', space=vmem, size = 0x12000, scoped, tag = 'internal scratch']
  %s0 = inlined_call_operand.hbm [shape: f32[8,8,32], index: 0, kind: input, shape index: {}]
  %s1 = inlined_call_operand.hbm [shape: f32[32,128], index: 1, kind: input, shape index: {}]
  %s2 = inlined_call_operand.vmem [shape: f32[1,128], index: 2, kind: input, shape index: {}]
  %s3 = inlined_call_operand.hbm [shape: f32[128,128], index: 3, kind: input, shape index: {}]
  %s4 = inlined_call_operand.vmem [shape: f32[1,128], index: 4, kind: input, shape index: {}]
  %s5 = inlined_call_operand.hbm [shape: f32[8,128], index: 5, kind: output, shape index: {}]
  %s6 = sld [smem:[#allocation0]]
  $region42: #{tpu_custom_call.1} parent=0
    _
  %s8 = ssub.s32 1, %s6
  %s9 = scalar_select 0, %s8, %s6
  $region1: #{tpu_custom_call.1} parent=0
    #allocation2 [shape = 'u8[32768]{0}', space=vmem, size = 0x8000, scoped, tag = 'input window, operand 0, single buffered']
    #allocation3 [shape = 's32[1]{0}', space=sflag, size = 0x4, scoped, tag = 'scoped memory for tpu_custom_call.1']
    #allocation4 [shape = 's32[1]{0}', space=sflag, size = 0x4, scoped, tag = 'scoped memory for tpu_custom_call.1']
    #allocation5 [shape = 'u8[16384]{0}', space=vmem, size = 0x4000, scoped, tag = 'input window, operand 1, single buffered']
    #allocation6 [shape = 's32[1]{0}', space=sflag, size = 0x4, scoped, tag = 'scoped memory for tpu_custom_call.1']
    #allocation7 [shape = 'u8[65536]{0}', space=vmem, size = 0x10000, scoped, tag = 'input window, operand 3, single buffered']
    #allocation8 [shape = 'u8[4096]{0}', space=vmem, size = 0x1000, scoped, tag = 'output window, operand 0, single buffered']
    %10 = vsyncpa [#allocation3], 0
    %11 = vsyncpa [#allocation6], 0
    %12 = vsyncpa [#allocation4], 0
    // Predicated region
    $region2: #{tpu_custom_call.1} parent=1 // pred_check
      _
    $region3: #{tpu_custom_call.1} parent=1 // pred_check_branch
      %14 = sbr.rel (0) target = $region5
    $region4: #{tpu_custom_call.1} parent=1 // pred_region
      %s16 = ssub.s32 1024, 1024
      %17 = vsyncadd [#allocation3], %s16
      %s18 = sshll.u32 [#allocation2], 4
      %s19 = int_to_ptr.vmem [resolvable:$true] %s18
      %24 = dma.hbm_to_vmem [thread:$0]  %s0, 1024, %s19, [#allocation3], 128, 128, 8
    $region5: #{tpu_custom_call.1} parent=1 // pred_fallthru
      _
    // Predicated region
    $region6: #{tpu_custom_call.1} parent=1 // pred_check
      _
    $region7: #{tpu_custom_call.1} parent=1 // pred_check_branch
      %26 = sbr.rel (0) target = $region9
    $region8: #{tpu_custom_call.1} parent=1 // pred_region
      %s28 = ssub.s32 512, 512
      %29 = vsyncadd [#allocation6], %s28
      %s30 = sshll.u32 [#allocation5], 4
      %s31 = int_to_ptr.vmem [resolvable:$true] %s30
      %36 = dma.hbm_to_vmem [thread:$0]  %s1, 512, %s31, [#allocation6], 128, 128, 8
    $region9: #{tpu_custom_call.1} parent=1 // pred_fallthru
      _
    // Predicated region
    $region10: #{tpu_custom_call.1} parent=1 // pred_check
      _
    $region11: #{tpu_custom_call.1} parent=1 // pred_check_branch
      %38 = sbr.rel (0) target = $region13
    $region12: #{tpu_custom_call.1} parent=1 // pred_region
      _
    $region13: #{tpu_custom_call.1} parent=1 // pred_fallthru
      _
    // Predicated region
    $region14: #{tpu_custom_call.1} parent=1 // pred_check
      _
    $region15: #{tpu_custom_call.1} parent=1 // pred_check_branch
      %40 = sbr.rel (0) target = $region17
    $region16: #{tpu_custom_call.1} parent=1 // pred_region
      %s42 = ssub.s32 2048, 2048
      %43 = vsyncadd [#allocation6], %s42
      %s44 = sshll.u32 [#allocation7], 4
      %s45 = int_to_ptr.vmem [resolvable:$true] %s44
      %50 = dma.hbm_to_vmem [thread:$0]  %s3, 2048, %s45, [#allocation6], 128, 128, 8
    $region17: #{tpu_custom_call.1} parent=1 // pred_fallthru
      _
    // Predicated region
    $region18: #{tpu_custom_call.1} parent=1 // pred_check
      _
    $region19: #{tpu_custom_call.1} parent=1 // pred_check_branch
      %52 = sbr.rel (0) target = $region21
    $region20: #{tpu_custom_call.1} parent=1 // pred_region
      _
    $region21: #{tpu_custom_call.1} parent=1 // pred_fallthru
      _
    // Predicated region
    $region22: #{tpu_custom_call.1} parent=1 // pred_check
      _
    $region23: #{tpu_custom_call.1} parent=1 // pred_check_branch
      %54 = sbr.rel (0) target = $region25
    $region24: #{tpu_custom_call.1} parent=1 // pred_region
      %55 = dma.done [#allocation3], 1024
    $region25: #{tpu_custom_call.1} parent=1 // pred_fallthru
      _
    // Predicated region
    $region26: #{tpu_custom_call.1} parent=1 // pred_check
      _
    $region27: #{tpu_custom_call.1} parent=1 // pred_check_branch
      %57 = sbr.rel (0) target = $region29
    $region28: #{tpu_custom_call.1} parent=1 // pred_region
      %58 = dma.done [#allocation6], 512
    $region29: #{tpu_custom_call.1} parent=1 // pred_fallthru
      _
    // Predicated region
    $region30: #{tpu_custom_call.1} parent=1 // pred_check
      _
    $region31: #{tpu_custom_call.1} parent=1 // pred_check_branch
      %60 = sbr.rel (0) target = $region33
    $region32: #{tpu_custom_call.1} parent=1 // pred_region
      %61 = dma.done [#allocation6], 2048
    $region33: #{tpu_custom_call.1} parent=1 // pred_fallthru
      _
    %v62 = vld [vmem:[#allocation2] sm:$0xff]
    %v63 = vld [vmem:[#allocation2 + $0x8] sm:$0xff]
    %v64 = vld [vmem:[#allocation2 + $0x10] sm:$0xff]
    %v65 = vld [vmem:[#allocation2 + $0x18] sm:$0xff]
    %v66 = vld [vmem:[#allocation2 + $0x20] sm:$0xff]
    %v67 = vld [vmem:[#allocation2 + $0x28] sm:$0xff]
    %v68 = vld [vmem:[#allocation2 + $0x30] sm:$0xff]
    %v69 = vld [vmem:[#allocation2 + $0x38] sm:$0xff]
    %vm70 = vcmask 261120
    %v71 = vsel %vm70, %v62, 0.0
    %v72 = vrot.slane %v71, 4
    %v73 = vadd.f32 %v71, %v72
    %v74 = vrot.slane %v73, 2
    %v75 = vadd.f32 %v73, %v74
    %v76 = vrot.slane %v75, 1
    %v77 = vadd.f32 %v75, %v76
    %v78 = vsel %vm70, %v63, 0.0
    %v79 = vrot.slane %v78, 4
    %v80 = vadd.f32 %v78, %v79
    %v81 = vrot.slane %v80, 2
    %v82 = vadd.f32 %v80, %v81
    %v83 = vrot.slane %v82, 1
    %v84 = vadd.f32 %v82, %v83
    %v85 = vsel %vm70, %v64, 0.0
    %v86 = vrot.slane %v85, 4
    %v87 = vadd.f32 %v85, %v86
    %v88 = vrot.slane %v87, 2
    %v89 = vadd.f32 %v87, %v88
    %v90 = vrot.slane %v89, 1
    %v91 = vadd.f32 %v89, %v90
    %v92 = vsel %vm70, %v65, 0.0
    %v93 = vrot.slane %v92, 4
    %v94 = vadd.f32 %v92, %v93
    %v95 = vrot.slane %v94, 2
    %v96 = vadd.f32 %v94, %v95
    %v97 = vrot.slane %v96, 1
    %v98 = vadd.f32 %v96, %v97
    %v99 = vsel %vm70, %v66, 0.0
    %v100 = vrot.slane %v99, 4
    %v101 = vadd.f32 %v99, %v100
    %v102 = vrot.slane %v101, 2
    %v103 = vadd.f32 %v101, %v102
    %v104 = vrot.slane %v103, 1
    %v105 = vadd.f32 %v103, %v104
    %v106 = vsel %vm70, %v67, 0.0
    %v107 = vrot.slane %v106, 4
    %v108 = vadd.f32 %v106, %v107
    %v109 = vrot.slane %v108, 2
    %v110 = vadd.f32 %v108, %v109
    %v111 = vrot.slane %v110, 1
    %v112 = vadd.f32 %v110, %v111
    %v113 = vsel %vm70, %v68, 0.0
    %v114 = vrot.slane %v113, 4
    %v115 = vadd.f32 %v113, %v114
    %v116 = vrot.slane %v115, 2
    %v117 = vadd.f32 %v115, %v116
    %v118 = vrot.slane %v117, 1
    %v119 = vadd.f32 %v117, %v118
    %v120 = vsel %vm70, %v69, 0.0
    %v121 = vrot.slane %v120, 4
    %v122 = vadd.f32 %v120, %v121
    %v123 = vrot.slane %v122, 2
    %v124 = vadd.f32 %v122, %v123
    %v125 = vrot.slane %v124, 1
    %v126 = vadd.f32 %v124, %v125
    %v127 = vld [vmem:[#allocation5] sm:$0xff]
    %v128 = vld [vmem:[#allocation5 + $0x8] sm:$0xff]
    %v129 = vld [vmem:[#allocation5 + $0x10] sm:$0xff]
    %v130 = vld [vmem:[#allocation5 + $0x18] sm:$0xff]
    %v131 = vld [vmem:[%s2] sm:$0x1]
    %v133 = vlaneseq
    %v134 = vshrl.u32 %v133, 7
    %v135 = vsub.s32 0, %v134
    %v136 = vrot.slane %v131, %v135
    %vm146 = vcmask 1041409
    %v147 = vsel %vm146, %v84, %v77
    %vm148 = vcmask 1042434
    %v149 = vsel %vm148, %v91, %v147
    %vm150 = vcmask 1043459
    %v151 = vsel %vm150, %v98, %v149
    %vm152 = vcmask 1044484
    %v153 = vsel %vm152, %v105, %v151
    %vm154 = vcmask 1045509
    %v155 = vsel %vm154, %v112, %v153
    %vm156 = vcmask 1046534
    %v157 = vsel %vm156, %v119, %v155
    %vm158 = vcmask 1047559
    %v159 = vsel %vm158, %v126, %v157
    %v160 = vsel %vm70, %v159, 0
    %162 = vmatprep.subr.mxu0 0.0
    %163 = vmatpush1.msra.mxu0 0.0
    %164 = vmatprep.subr.mxu0 0.0
    %165 = vmatpush1.msra.mxu0 0.0
    %166 = vmatprep.subr.mxu0 0.0
    %167 = vmatpush1.msra.mxu0 0.0
    %168 = vmatprep.subr.mxu0 0.0
    %169 = vmatpush1.msra.mxu0 0.0
    %170 = vmatprep.subr.mxu0 0.0
    %171 = vmatpush1.msra.mxu0 0.0
    %172 = vmatprep.subr.mxu0 0.0
    %173 = vmatpush1.msra.mxu0 0.0
    %174 = vmatprep.subr.mxu0 0.0
    %175 = vmatpush1.msra.mxu0 0.0
    %176 = vmatprep.subr.mxu0 0.0
    %177 = vmatpush1.msra.mxu0 0.0
    %178 = vmatprep.subr.mxu0 0.0
    %179 = vmatpush1.msra.mxu0 0.0
    %180 = vmatprep.subr.mxu0 0.0
    %181 = vmatpush1.msra.mxu0 0.0
    %182 = vmatprep.subr.mxu0 0.0
    %183 = vmatpush1.msra.mxu0 0.0
    %184 = vmatprep.subr.mxu0 0.0
    %185 = vmatpush1.msra.mxu0 0.0
    %186 = vmatprep.subr.mxu0 0.0
    %187 = vmatpush1.msra.mxu0 %v130
    %188 = vmatprep.subr.mxu0 0.0
    %189 = vmatpush1.msra.mxu0 %v129
    %190 = vmatprep.subr.mxu0 0.0
    %191 = vmatpush1.msra.mxu0 %v128
    %192 = vmatprep.subr.mxu0 0.0
    %193 = vmatpush1.msra.mxu0 %v127
    %194 = vmatprep.subr.mxu0 0.0
    %195 = vmatpush2.msra.mxu0 0.0
    %196 = vmatprep.subr.mxu0 0.0
    %197 = vmatpush2.msra.mxu0 0.0
    %198 = vmatprep.subr.mxu0 0.0
    %199 = vmatpush2.msra.mxu0 0.0
    %200 = vmatprep.subr.mxu0 0.0
    %201 = vmatpush2.msra.mxu0 0.0
    %202 = vmatprep.subr.mxu0 0.0
    %203 = vmatpush2.msra.mxu0 0.0
    %204 = vmatprep.subr.mxu0 0.0
    %205 = vmatpush2.msra.mxu0 0.0
    %206 = vmatprep.subr.mxu0 0.0
    %207 = vmatpush2.msra.mxu0 0.0
    %208 = vmatprep.subr.mxu0 0.0
    %209 = vmatpush2.msra.mxu0 0.0
    %210 = vmatprep.subr.mxu0 0.0
    %211 = vmatpush2.msra.mxu0 0.0
    %212 = vmatprep.subr.mxu0 0.0
    %213 = vmatpush2.msra.mxu0 0.0
    %214 = vmatprep.subr.mxu0 0.0
    %215 = vmatpush2.msra.mxu0 0.0
    %216 = vmatprep.subr.mxu0 0.0
    %217 = vmatpush2.msra.mxu0 0.0
    %218 = vmatprep.subr.mxu0 0.0
    %219 = vmatpush2.msra.mxu0 0.0
    %220 = vmatprep.subr.mxu0 0.0
    %221 = vmatpush2.msra.mxu0 0.0
    %222 = vmatprep.subr.mxu0 0.0
    %223 = vmatpush2.msra.mxu0 0.0
    %224 = vmatprep.subr.mxu0 0.0
    %225 = vmatpush2.msra.mxu0 0.0
    %226 = vmatprep.mubr.f32.mxu0 0.0
    %227 = vmatmul.mubr.f32.gmra.mxu0 %v160
    %v228 = vpop.f32.mrf.mxu0
    %v229 = vadd.f32 %v136, %v228
    %v230 = vpop.f32.mrf.mxu0
    %231 = vdwg.mxu0
    %v232 = vmax.f32 %v229, 0.0
    %v233 = vld [vmem:[#allocation7] sm:$0xff]
    %v234 = vld [vmem:[#allocation7 + $0x8] sm:$0xff]
    %v235 = vld [vmem:[#allocation7 + $0x10] sm:$0xff]
    %v236 = vld [vmem:[#allocation7 + $0x18] sm:$0xff]
    %v237 = vld [vmem:[#allocation7 + $0x20] sm:$0xff]
    %v238 = vld [vmem:[#allocation7 + $0x28] sm:$0xff]
    %v239 = vld [vmem:[#allocation7 + $0x30] sm:$0xff]
    %v240 = vld [vmem:[#allocation7 + $0x38] sm:$0xff]
    %v241 = vld [vmem:[#allocation7 + $0x40] sm:$0xff]
    %v242 = vld [vmem:[#allocation7 + $0x48] sm:$0xff]
    %v243 = vld [vmem:[#allocation7 + $0x50] sm:$0xff]
    %v244 = vld [vmem:[#allocation7 + $0x58] sm:$0xff]
    %v245 = vld [vmem:[#allocation7 + $0x60] sm:$0xff]
    %v246 = vld [vmem:[#allocation7 + $0x68] sm:$0xff]
    %v247 = vld [vmem:[#allocation7 + $0x70] sm:$0xff]
    %v248 = vld [vmem:[#allocation7 + $0x78] sm:$0xff]
    %v249 = vld [vmem:[%s4] sm:$0x1]
    %v251 = vlaneseq
    %v252 = vshrl.u32 %v251, 7
    %v253 = vsub.s32 0, %v252
    %v254 = vrot.slane %v249, %v253
    %256 = vmatprep.subr.mxu0 0.0
    %257 = vmatpush1.msra.mxu0 %v248
    %258 = vmatprep.subr.mxu0 0.0
    %259 = vmatpush1.msra.mxu0 %v247
    %260 = vmatprep.subr.mxu0 0.0
    %261 = vmatpush1.msra.mxu0 %v246
    %262 = vmatprep.subr.mxu0 0.0
    %263 = vmatpush1.msra.mxu0 %v245
    %264 = vmatprep.subr.mxu0 0.0
    %265 = vmatpush1.msra.mxu0 %v244
    %266 = vmatprep.subr.mxu0 0.0
    %267 = vmatpush1.msra.mxu0 %v243
    %268 = vmatprep.subr.mxu0 0.0
    %269 = vmatpush1.msra.mxu0 %v242
    %270 = vmatprep.subr.mxu0 0.0
    %271 = vmatpush1.msra.mxu0 %v241
    %272 = vmatprep.subr.mxu0 0.0
    %273 = vmatpush1.msra.mxu0 %v240
    %274 = vmatprep.subr.mxu0 0.0
    %275 = vmatpush1.msra.mxu0 %v239
    %276 = vmatprep.subr.mxu0 0.0
    %277 = vmatpush1.msra.mxu0 %v238
    %278 = vmatprep.subr.mxu0 0.0
    %279 = vmatpush1.msra.mxu0 %v237
    %280 = vmatprep.subr.mxu0 0.0
    %281 = vmatpush1.msra.mxu0 %v236
    %282 = vmatprep.subr.mxu0 0.0
    %283 = vmatpush1.msra.mxu0 %v235
    %284 = vmatprep.subr.mxu0 0.0
    %285 = vmatpush1.msra.mxu0 %v234
    %286 = vmatprep.subr.mxu0 0.0
    %287 = vmatpush1.msra.mxu0 %v233
    %288 = vmatprep.subr.mxu0 0.0
    %289 = vmatpush2.msra.mxu0 0.0
    %290 = vmatprep.subr.mxu0 0.0
    %291 = vmatpush2.msra.mxu0 0.0
    %292 = vmatprep.subr.mxu0 0.0
    %293 = vmatpush2.msra.mxu0 0.0
    %294 = vmatprep.subr.mxu0 0.0
    %295 = vmatpush2.msra.mxu0 0.0
    %296 = vmatprep.subr.mxu0 0.0
    %297 = vmatpush2.msra.mxu0 0.0
    %298 = vmatprep.subr.mxu0 0.0
    %299 = vmatpush2.msra.mxu0 0.0
    %300 = vmatprep.subr.mxu0 0.0
    %301 = vmatpush2.msra.mxu0 0.0
    %302 = vmatprep.subr.mxu0 0.0
    %303 = vmatpush2.msra.mxu0 0.0
    %304 = vmatprep.subr.mxu0 0.0
    %305 = vmatpush2.msra.mxu0 0.0
    %306 = vmatprep.subr.mxu0 0.0
    %307 = vmatpush2.msra.mxu0 0.0
    %308 = vmatprep.subr.mxu0 0.0
    %309 = vmatpush2.msra.mxu0 0.0
    %310 = vmatprep.subr.mxu0 0.0
    %311 = vmatpush2.msra.mxu0 0.0
    %312 = vmatprep.subr.mxu0 0.0
    %313 = vmatpush2.msra.mxu0 0.0
    %314 = vmatprep.subr.mxu0 0.0
    %315 = vmatpush2.msra.mxu0 0.0
    %316 = vmatprep.subr.mxu0 0.0
    %317 = vmatpush2.msra.mxu0 0.0
    %318 = vmatprep.subr.mxu0 0.0
    %319 = vmatpush2.msra.mxu0 0.0
    %320 = vmatprep.mubr.f32.mxu0 0.0
    %321 = vmatmul.mubr.f32.gmra.mxu0 %v232
    %v322 = vpop.f32.mrf.mxu0
    %v323 = vadd.f32 %v254, %v322
    %v324 = vpop.f32.mrf.mxu0
    %325 = vdwg.mxu0
    %326 = vst [vmem:[#allocation8] sm:$0xff] %v323
    // Predicated region
    $region34: #{tpu_custom_call.1} parent=1 // pred_check
      _
    $region35: #{tpu_custom_call.1} parent=1 // pred_check_branch
      %328 = sbr.rel (0) target = $region37
    $region36: #{tpu_custom_call.1} parent=1 // pred_region
      %s330 = ssub.s32 128, 128
      %331 = vsyncadd [#allocation4], %s330
      %s333 = sshll.u32 [#allocation8], 4
      %s334 = int_to_ptr.vmem [resolvable:$true] %s333
      %336 = dma.vmem_to_hbm [thread:$0]  %s334, 128, %s5, [#allocation4]
    $region37: #{tpu_custom_call.1} parent=1 // pred_fallthru
      _
    // Predicated region
    $region38: #{tpu_custom_call.1} parent=1 // pred_check
      _
    $region39: #{tpu_custom_call.1} parent=1 // pred_check_branch
      %338 = sbr.rel (0) target = $region41
    $region40: #{tpu_custom_call.1} parent=1 // pred_region
      %339 = dma.done [#allocation4], 128
    $region41: #{tpu_custom_call.1} parent=1 // pred_fallthru
      _
    %340 = vsyncpa [#allocation3], 1
    %341 = vsyncpa [#allocation6], 1
    %342 = vsyncpa [#allocation4], 1

</llo_original>
